<compile_context>
chip_gen: v5e
topology: v5e:2x2
jax: 0.10.0
libtpu: 0.0.40
codegen_flags: <defaults>
</compile_context>

<pallas_src>
import functools

import jax
import jax.numpy as jnp
from jax.experimental import pallas as pl
from jax.experimental.pallas import tpu as pltpu


def _round_up(x, m):
    return ((x + m - 1) // m) * m


def _is_v7x():
    try:
        kind = jax.devices()[0].device_kind.lower()
    except Exception:
        return False
    return ("v7" in kind) or ("7x" in kind)


def _bce_iou_kernel(p_ref, m_ref, out_ref, acc_b_ref, acc_i_ref, acc_u_ref,
                    *, rem, mask_last):
    """One (TR, TK) tile of the (NC, HW) problem.

    acc_*_ref : resident (TR, 128) f32 scratch accumulators (bce / inter / union),
                folded full-width every HW tile.
    out_ref   : (TR, 128) output block, written once per row tile at k == last:
                lane 0 = sum(bce), lane 1 = sum(pred*mask), lane 2 = sum(pred+mask).
    rem       : number of valid lanes in the last HW tile (static).
    mask_last : whether the last HW tile contains lane padding (static).
    """
    k = pl.program_id(1)
    num_k = pl.num_programs(1)
    tr, tk = p_ref.shape
    n_lane_blocks = tk // 128

    @pl.when(k == 0)
    def _():
        acc_b_ref[...] = jnp.zeros_like(acc_b_ref)
        acc_i_ref[...] = jnp.zeros_like(acc_i_ref)
        acc_u_ref[...] = jnp.zeros_like(acc_u_ref)

    eps = 1e-07

    def fold128(x):
        # (TR, TK) -> (TR, 128) by summing aligned 128-lane groups (pure VALU,
        # no reshape/relayout, no cross-lane XLU work).
        r = x[:, 0:128]
        for j in range(1, n_lane_blocks):
            r = r + x[:, j * 128:(j + 1) * 128]
        return r

    def accumulate(apply_mask):
        p = p_ref[...].astype(jnp.float32)
        m = m_ref[...].astype(jnp.float32)

        # torch.clamp(pred, eps, 1 - eps)
        p = jnp.clip(p, eps, 1.0 - eps)

        # Factored BCE: -(m*log(p) + (1-m)*log(1-p)) == -(lq + m*(log(p)-lq))
        lq = jnp.log1p(-p)
        d = jnp.log(p) - lq
        bce = -(lq + m * d)
        pm = p * m
        pp = p + m

        if apply_mask:
            # Only the last HW tile can contain lane padding; zero it out so
            # clip()-mapped garbage never contaminates the sums.
            col = jax.lax.broadcasted_iota(jnp.int32, (tr, tk), 1)
            valid = col < rem
            zero = jnp.zeros_like(bce)
            bce = jnp.where(valid, bce, zero)
            pm = jnp.where(valid, pm, zero)
            pp = jnp.where(valid, pp, zero)

        acc_b_ref[...] += fold128(bce)
        acc_i_ref[...] += fold128(pm)
        acc_u_ref[...] += fold128(pp)

    if mask_last:
        @pl.when(k == num_k - 1)
        def _():
            accumulate(True)

        @pl.when(k < num_k - 1)
        def _():
            accumulate(False)
    else:
        accumulate(False)

    @pl.when(k == num_k - 1)
    def _():
        # One XLU cross-lane reduce per accumulator per row tile, then a
        # single packed write of the three per-row statistics.
        bce_s = jnp.sum(acc_b_ref[...], axis=-1, keepdims=True)
        inter_s = jnp.sum(acc_i_ref[...], axis=-1, keepdims=True)
        union_s = jnp.sum(acc_u_ref[...], axis=-1, keepdims=True)
        out_ref[...] = jnp.zeros_like(out_ref)
        out_ref[:, 0:3] = jnp.concatenate([bce_s, inter_s, union_s], axis=-1)


def bce_iou_loss(pred, mask):
    """Equivalent of BceIouLoss().forward(pred, mask) for NCHW inputs.

    Returns an array of shape (N,):
        wbce (scalar mean BCE over all elements) + mean_C(wiou[n, c])
    """
    N, C, H, W = pred.shape
    NC, HW = N * C, H * W

    p2 = pred.reshape(NC, HW)
    m2 = mask.reshape(NC, HW)

    # Min sublane tile is (8, 128) for 32-bit dtypes, (16, 128) for packed.
    row_align = 8 if (p2.dtype.itemsize >= 4 and m2.dtype.itemsize >= 4) else 16

    # Lane tile: multiple of 128, capped at 8192 lanes; the last HW tile may
    # be partial (masked in-kernel) -- no rounding of HW to tk granularity.
    tk = min(_round_up(HW, 128), 8192)

    # Row tile: target ~2 MiB per f32 input block (intermediates + 2x double-
    # buffered inputs stay well under 32 MiB scoped VMEM on every chip).
    target_block_bytes = 2 * 1024 * 1024
    tr = max(row_align, ((target_block_bytes // (tk * 4)) // row_align) * row_align)
    tr = min(tr, _round_up(NC, row_align))

    grid = (pl.cdiv(NC, tr), pl.cdiv(HW, tk))
    num_k = grid[1]
    rem = HW - (num_k - 1) * tk          # valid lanes in last HW tile (static)
    mask_last = rem != tk

    kernel = functools.partial(_bce_iou_kernel, rem=rem, mask_last=mask_last)

    in_bytes = p2.size * p2.dtype.itemsize + m2.size * m2.dtype.itemsize
    cost = pl.CostEstimate(
        flops=12 * NC * HW,
        transcendentals=2 * NC * HW,
        bytes_accessed=in_bytes + NC * 128 * 4,
    )

    def run(row_sem):
        return pl.pallas_call(
            kernel,
            out_shape=jax.ShapeDtypeStruct((NC, 128), jnp.float32),
            grid_spec=pltpu.PrefetchScalarGridSpec(
                num_scalar_prefetch=0,
                grid=grid,
                in_specs=[
                    pl.BlockSpec((tr, tk), lambda i, k: (i, k)),
                    pl.BlockSpec((tr, tk), lambda i, k: (i, k)),
                ],
                out_specs=pl.BlockSpec((tr, 128), lambda i, k: (i, 0)),
                scratch_shapes=[pltpu.VMEM((tr, 128), jnp.float32)] * 3,
            ),
            compiler_params=pltpu.CompilerParams(
                # Row axis independent; HW reduction axis last + arbitrary
                # (output / scratch blocks are revisited across it).
                dimension_semantics=(row_sem, pltpu.ARBITRARY),
                # Above the v5e 16 MiB default, within every chip's per-core
                # budget (v7x: 64 MiB/TC).
                vmem_limit_bytes=32 * 1024 * 1024,
            ),
            cost_estimate=cost,
        )(p2, m2)

    # v7x has 2 TensorCores/chip: split the row-tile range across both cores.
    row_sem = pltpu.CORE_PARALLEL if _is_v7x() else pltpu.PARALLEL
    try:
        stats = run(row_sem)
    except Exception:
        if row_sem is pltpu.PARALLEL:
            raise
        stats = run(pltpu.PARALLEL)   # portable fallback

    bce_sum = stats[:, 0]
    inter = stats[:, 1]
    union = stats[:, 2]

    # wbce = mean of elementwise BCE over ALL real elements (scalar), matching
    # F.binary_cross_entropy(reduction='mean').
    wbce = jnp.sum(bce_sum) / jnp.float32(NC * HW)
    wiou = 1.0 - (inter + 1.0) / (union - inter + 1.0)   # shape (NC,)

    # forward: (wbce + wiou).flatten(1).mean(1)
    return wbce + jnp.mean(wiou.reshape(N, C), axis=1)


def _reference(pred, mask):
    """Pure-JAX reference mirroring the PyTorch module."""
    eps = 1e-07
    p = jnp.clip(pred, eps, 1.0 - eps)
    wbce = jnp.mean(-(mask * jnp.log(p) + (1.0 - mask) * jnp.log(1.0 - p)))
    inter = jnp.sum(p * mask, axis=(2, 3))
    union = jnp.sum(p + mask, axis=(2, 3))
    wiou = 1.0 - (inter + 1.0) / (union - inter + 1.0)
    return jnp.mean(wbce + wiou, axis=1)


if __name__ == "__main__":
    key = jax.random.PRNGKey(0)
    k1, k2, k3, k4 = jax.random.split(key, 4)

    # Case 1: small aligned NCHW shapes (batch=2, channels=4, spatial=16x16).
    N, C, H, W = 2, 4, 16, 16
    pred = jax.nn.sigmoid(jax.random.normal(k1, (N, C, H, W), dtype=jnp.float32))
    mask = (jax.random.uniform(k2, (N, C, H, W)) > 0.5).astype(jnp.float32)

    out = jax.block_until_ready(bce_iou_loss(pred, mask))
    ref = jax.block_until_ready(_reference(pred, mask))
    assert out.shape == (N,)
    assert jnp.allclose(out, ref, atol=1e-5, rtol=1e-5)

    # Case 2: NC not a multiple of 8 and HW not a multiple of 128 — exercises
    # the partial row tile (dropped OOB writes) and masked last HW tile paths.
    N2, C2, H2, W2 = 2, 3, 15, 15
    pred2 = jax.nn.sigmoid(jax.random.normal(k3, (N2, C2, H2, W2), dtype=jnp.float32))
    mask2 = (jax.random.uniform(k4, (N2, C2, H2, W2)) > 0.5).astype(jnp.float32)

    out2 = jax.block_until_ready(bce_iou_loss(pred2, mask2))
    ref2 = jax.block_until_ready(_reference(pred2, mask2))
    assert out2.shape == (N2,)
    assert jnp.allclose(out2, ref2, atol=1e-5, rtol=1e-5)

    print("KERNEL_OK")
</pallas_src>

<mosaic_0001>
module attributes {stable_mosaic.version = 11 : i64} {
  func.func @_bce_iou_kernel(%arg0: i32, %arg1: i32, %arg2: memref<8x256xf32, #tpu.memory_space<vmem>>, %arg3: memref<8x256xf32, #tpu.memory_space<vmem>>, %arg4: memref<8x128xf32, #tpu.memory_space<vmem>>, %arg5: memref<8x128xf32, #tpu.memory_space<vmem>>, %arg6: memref<8x128xf32, #tpu.memory_space<vmem>>, %arg7: memref<8x128xf32, #tpu.memory_space<vmem>>) attributes {dimension_semantics = [#tpu.dimension_semantics<parallel>, #tpu.dimension_semantics<arbitrary>], iteration_bounds = array<i64: 1, 1>, scalar_prefetch = 0 : i64, scratch_operands = 3 : i64, tpu.core_type = #tpu.core_type<tc>, window_params = [{transform_indices = @transform_0, window_bounds = array<i64: 8, 256>}, {transform_indices = @transform_1, window_bounds = array<i64: 8, 256>}, {transform_indices = @transform_2, window_bounds = array<i64: 8, 128>}]} {
    %c0_i32 = arith.constant 0 : i32
    %0 = arith.cmpi eq, %arg1, %c0_i32 : i32
    %1 = arith.extui %0 : i1 to i32
    %c0_i32_0 = arith.constant 0 : i32
    %2 = arith.cmpi ne, %1, %c0_i32_0 : i32
    scf.if %2 {
      %cst_21 = arith.constant 0.000000e+00 : f32
      %41 = vector.broadcast %cst_21 : f32 to vector<8x128xf32>
      %c0_22 = arith.constant 0 : index
      %c0_23 = arith.constant 0 : index
      %42 = vector.load %arg5[%c0_22, %c0_23] : memref<8x128xf32, #tpu.memory_space<vmem>>, vector<8x128xf32>
      tpu.vector_store %arg5[%c0_22, %c0_23], %41 {strides = array<i32>} : memref<8x128xf32, #tpu.memory_space<vmem>>, vector<8x128xf32>,
      %cst_24 = arith.constant 0.000000e+00 : f32
      %43 = vector.broadcast %cst_24 : f32 to vector<8x128xf32>
      %c0_25 = arith.constant 0 : index
      %c0_26 = arith.constant 0 : index
      %44 = vector.load %arg6[%c0_25, %c0_26] : memref<8x128xf32, #tpu.memory_space<vmem>>, vector<8x128xf32>
      tpu.vector_store %arg6[%c0_25, %c0_26], %43 {strides = array<i32>} : memref<8x128xf32, #tpu.memory_space<vmem>>, vector<8x128xf32>,
      %cst_27 = arith.constant 0.000000e+00 : f32
      %45 = vector.broadcast %cst_27 : f32 to vector<8x128xf32>
      %c0_28 = arith.constant 0 : index
      %c0_29 = arith.constant 0 : index
      %46 = vector.load %arg7[%c0_28, %c0_29] : memref<8x128xf32, #tpu.memory_space<vmem>>, vector<8x128xf32>
      tpu.vector_store %arg7[%c0_28, %c0_29], %45 {strides = array<i32>} : memref<8x128xf32, #tpu.memory_space<vmem>>, vector<8x128xf32>,
    } else {
    }
    %c0 = arith.constant 0 : index
    %c0_1 = arith.constant 0 : index
    %3 = vector.load %arg2[%c0, %c0_1] : memref<8x256xf32, #tpu.memory_space<vmem>>, vector<8x256xf32>
    %c0_2 = arith.constant 0 : index
    %c0_3 = arith.constant 0 : index
    %4 = vector.load %arg3[%c0_2, %c0_3] : memref<8x256xf32, #tpu.memory_space<vmem>>, vector<8x256xf32>
    %cst = arith.constant 1.000000e-07 : f32
    %cst_4 = arith.constant 0.99999988 : f32
    %5 = vector.broadcast %cst : f32 to vector<8x256xf32>
    %6 = arith.maximumf %5, %3 : vector<8x256xf32>
    %7 = vector.broadcast %cst_4 : f32 to vector<8x256xf32>
    %8 = arith.minimumf %7, %6 : vector<8x256xf32>
    %cst_5 = arith.constant 0.000000e+00 : f32
    %9 = vector.broadcast %cst_5 : f32 to vector<8x256xf32>
    %10 = arith.subf %9, %8 : vector<8x256xf32>
    %11 = math.log1p %10 : vector<8x256xf32>
    %12 = math.log %8 : vector<8x256xf32>
    %13 = arith.subf %12, %11 : vector<8x256xf32>
    %14 = arith.mulf %4, %13 : vector<8x256xf32>
    %15 = arith.addf %11, %14 : vector<8x256xf32>
    %cst_6 = arith.constant 0.000000e+00 : f32
    %16 = vector.broadcast %cst_6 : f32 to vector<8x256xf32>
    %17 = arith.subf %16, %15 : vector<8x256xf32>
    %18 = arith.mulf %8, %4 : vector<8x256xf32>
    %19 = arith.addf %8, %4 : vector<8x256xf32>
    %c0_7 = arith.constant 0 : index
    %c0_8 = arith.constant 0 : index
    %20 = vector.load %arg5[%c0_7, %c0_8] : memref<8x128xf32, #tpu.memory_space<vmem>>, vector<8x128xf32>
    %21 = vector.extract_strided_slice %17 {offsets = [0, 0], sizes = [8, 128], strides = [1, 1]} : vector<8x256xf32> to vector<8x128xf32>
    %22 = vector.extract_strided_slice %17 {offsets = [0, 128], sizes = [8, 128], strides = [1, 1]} : vector<8x256xf32> to vector<8x128xf32>
    %23 = arith.addf %21, %22 : vector<8x128xf32>
    %24 = arith.addf %20, %23 : vector<8x128xf32>
    %c0_9 = arith.constant 0 : index
    %c0_10 = arith.constant 0 : index
    %25 = vector.load %arg5[%c0_9, %c0_10] : memref<8x128xf32, #tpu.memory_space<vmem>>, vector<8x128xf32>
    tpu.vector_store %arg5[%c0_9, %c0_10], %24 {strides = array<i32>} : memref<8x128xf32, #tpu.memory_space<vmem>>, vector<8x128xf32>,
    %c0_11 = arith.constant 0 : index
    %c0_12 = arith.constant 0 : index
    %26 = vector.load %arg6[%c0_11, %c0_12] : memref<8x128xf32, #tpu.memory_space<vmem>>, vector<8x128xf32>
    %27 = vector.extract_strided_slice %18 {offsets = [0, 0], sizes = [8, 128], strides = [1, 1]} : vector<8x256xf32> to vector<8x128xf32>
    %28 = vector.extract_strided_slice %18 {offsets = [0, 128], sizes = [8, 128], strides = [1, 1]} : vector<8x256xf32> to vector<8x128xf32>
    %29 = arith.addf %27, %28 : vector<8x128xf32>
    %30 = arith.addf %26, %29 : vector<8x128xf32>
    %c0_13 = arith.constant 0 : index
    %c0_14 = arith.constant 0 : index
    %31 = vector.load %arg6[%c0_13, %c0_14] : memref<8x128xf32, #tpu.memory_space<vmem>>, vector<8x128xf32>
    tpu.vector_store %arg6[%c0_13, %c0_14], %30 {strides = array<i32>} : memref<8x128xf32, #tpu.memory_space<vmem>>, vector<8x128xf32>,
    %c0_15 = arith.constant 0 : index
    %c0_16 = arith.constant 0 : index
    %32 = vector.load %arg7[%c0_15, %c0_16] : memref<8x128xf32, #tpu.memory_space<vmem>>, vector<8x128xf32>
    %33 = vector.extract_strided_slice %19 {offsets = [0, 0], sizes = [8, 128], strides = [1, 1]} : vector<8x256xf32> to vector<8x128xf32>
    %34 = vector.extract_strided_slice %19 {offsets = [0, 128], sizes = [8, 128], strides = [1, 1]} : vector<8x256xf32> to vector<8x128xf32>
    %35 = arith.addf %33, %34 : vector<8x128xf32>
    %36 = arith.addf %32, %35 : vector<8x128xf32>
    %c0_17 = arith.constant 0 : index
    %c0_18 = arith.constant 0 : index
    %37 = vector.load %arg7[%c0_17, %c0_18] : memref<8x128xf32, #tpu.memory_space<vmem>>, vector<8x128xf32>
    tpu.vector_store %arg7[%c0_17, %c0_18], %36 {strides = array<i32>} : memref<8x128xf32, #tpu.memory_space<vmem>>, vector<8x128xf32>,
    %c0_i32_19 = arith.constant 0 : i32
    %38 = arith.cmpi eq, %arg1, %c0_i32_19 : i32
    %39 = arith.extui %38 : i1 to i32
    %c0_i32_20 = arith.constant 0 : i32
    %40 = arith.cmpi ne, %39, %c0_i32_20 : i32
    scf.if %40 {
      %c0_21 = arith.constant 0 : index
      %c0_22 = arith.constant 0 : index
      %41 = vector.load %arg5[%c0_21, %c0_22] : memref<8x128xf32, #tpu.memory_space<vmem>>, vector<8x128xf32>
      %cst_23 = arith.constant dense<0.000000e+00> : vector<8xf32>
      %42 = vector.multi_reduction <add>, %41, %cst_23 [1] : vector<8x128xf32> to vector<8xf32>
      %43 = vector.shape_cast %42 : vector<8xf32> to vector<8x1xf32>
      %c0_24 = arith.constant 0 : index
      %c0_25 = arith.constant 0 : index
      %44 = vector.load %arg6[%c0_24, %c0_25] : memref<8x128xf32, #tpu.memory_space<vmem>>, vector<8x128xf32>
      %cst_26 = arith.constant dense<0.000000e+00> : vector<8xf32>
      %45 = vector.multi_reduction <add>, %44, %cst_26 [1] : vector<8x128xf32> to vector<8xf32>
      %46 = vector.shape_cast %45 : vector<8xf32> to vector<8x1xf32>
      %c0_27 = arith.constant 0 : index
      %c0_28 = arith.constant 0 : index
      %47 = vector.load %arg7[%c0_27, %c0_28] : memref<8x128xf32, #tpu.memory_space<vmem>>, vector<8x128xf32>
      %cst_29 = arith.constant dense<0.000000e+00> : vector<8xf32>
      %48 = vector.multi_reduction <add>, %47, %cst_29 [1] : vector<8x128xf32> to vector<8xf32>
      %49 = vector.shape_cast %48 : vector<8xf32> to vector<8x1xf32>
      %cst_30 = arith.constant 0.000000e+00 : f32
      %50 = vector.broadcast %cst_30 : f32 to vector<8x128xf32>
      %c0_31 = arith.constant 0 : index
      %c0_32 = arith.constant 0 : index
      %51 = vector.load %arg4[%c0_31, %c0_32] : memref<8x128xf32, #tpu.memory_space<vmem>>, vector<8x128xf32>
      tpu.vector_store %arg4[%c0_31, %c0_32], %50 {strides = array<i32>} : memref<8x128xf32, #tpu.memory_space<vmem>>, vector<8x128xf32>,
      %52 = tpu.concatenate %43, %46, %49 in 1 : vector<8x1xf32>, vector<8x1xf32>, vector<8x1xf32> -> vector<8x3xf32>
      %c0_33 = arith.constant 0 : index
      %c0_34 = arith.constant 0 : index
      %53 = vector.load %arg4[%c0_33, %c0_34] : memref<8x128xf32, #tpu.memory_space<vmem>>, vector<8x3xf32>
      tpu.vector_store %arg4[%c0_33, %c0_34], %52 {strides = array<i32>} : memref<8x128xf32, #tpu.memory_space<vmem>>, vector<8x3xf32>,
    } else {
    }
    return
  }
  func.func @transform_0(%arg0: i32, %arg1: i32) -> (i32, i32) {
    %c0_i32 = arith.constant 0 : i32
    return %arg0, %arg1 : i32, i32
  }
  func.func @transform_1(%arg0: i32, %arg1: i32) -> (i32, i32) {
    %c0_i32 = arith.constant 0 : i32
    return %arg0, %arg1 : i32, i32
  }
  func.func @transform_2(%arg0: i32, %arg1: i32) -> (i32, i32) {
    %c0_i32 = arith.constant 0 : i32
    %c0_i32_0 = arith.constant 0 : i32
    return %arg0, %c0_i32 : i32, i32
  }
}

</mosaic_0001>

<llo_original>
// kernel: tpu_custom_call.1
$region0: #{tpu_custom_call.1}
  #allocation0 [shape = 'u32[]', space=smem, size = 0x4, offset = 0x4, fixed_abs, tag = 'smem constant byte address 0x4 - core index']
  #allocation1 [shape = 'u32[72,128]{1,0:T(1,128)}', space=vmem, size = 0x9000, scoped, tag = 'internal scratch']
  #allocation2 [shape = 'f32[8,128]{1,0:T(8,128)}', space=vmem, size = 0x1000, scoped, tag = 'scratch operand']
  #allocation3 [shape = 'f32[8,128]{1,0:T(8,128)}', space=vmem, size = 0x1000, scoped, tag = 'scratch operand']
  #allocation4 [shape = 'f32[8,128]{1,0:T(8,128)}', space=vmem, size = 0x1000, scoped, tag = 'scratch operand']
  %s0 = inlined_call_operand.hbm [shape: f32[8,256], index: 0, kind: input, shape index: {}]
  %s1 = inlined_call_operand.hbm [shape: f32[8,256], index: 1, kind: input, shape index: {}]
  %s2 = inlined_call_operand.hbm [shape: f32[8,128], index: 2, kind: output, shape index: {}]
  %s3 = sld [smem:[#allocation0]]
  $region34: #{tpu_custom_call.1} parent=0
    _
  %s5 = ssub.s32 1, %s3
  %s6 = scalar_select 0, %s5, %s3
  $region1: #{tpu_custom_call.1} parent=0
    #allocation5 [shape = 'u8[8192]{0}', space=vmem, size = 0x2000, scoped, tag = 'input window, operand 0, single buffered']
    #allocation6 [shape = 's32[1]{0}', space=sflag, size = 0x4, scoped, tag = 'scoped memory for tpu_custom_call.1']
    #allocation7 [shape = 's32[1]{0}', space=sflag, size = 0x4, scoped, tag = 'scoped memory for tpu_custom_call.1']
    #allocation8 [shape = 'u8[8192]{0}', space=vmem, size = 0x2000, scoped, tag = 'input window, operand 1, single buffered']
    #allocation9 [shape = 's32[1]{0}', space=sflag, size = 0x4, scoped, tag = 'scoped memory for tpu_custom_call.1']
    #allocation10 [shape = 'u8[4096]{0}', space=vmem, size = 0x1000, scoped, tag = 'output window, operand 0, single buffered']
    %7 = vsyncpa [#allocation6], 0
    %8 = vsyncpa [#allocation9], 0
    %9 = vsyncpa [#allocation7], 0
    // Predicated region
    $region2: #{tpu_custom_call.1} parent=1 // pred_check
      _
    $region3: #{tpu_custom_call.1} parent=1 // pred_check_branch
      %11 = sbr.rel (0) target = $region5
    $region4: #{tpu_custom_call.1} parent=1 // pred_region
      %13 = vsyncadd [#allocation6], 0
      %s15 = sshll.u32 %s0, 4
      %s16 = int_to_ptr.hbm [resolvable:$true] %s15
      %s17 = sshll.u32 [#allocation5], 4
      %s18 = int_to_ptr.vmem [resolvable:$true] %s17
      %20 = dma.hbm_to_vmem [thread:$0]  %s16, 256, %s18, [#allocation6]
    $region5: #{tpu_custom_call.1} parent=1 // pred_fallthru
      _
    // Predicated region
    $region6: #{tpu_custom_call.1} parent=1 // pred_check
      _
    $region7: #{tpu_custom_call.1} parent=1 // pred_check_branch
      %22 = sbr.rel (0) target = $region9
    $region8: #{tpu_custom_call.1} parent=1 // pred_region
      %24 = vsyncadd [#allocation9], 0
      %s26 = sshll.u32 %s1, 4
      %s27 = int_to_ptr.hbm [resolvable:$true] %s26
      %s28 = sshll.u32 [#allocation8], 4
      %s29 = int_to_ptr.vmem [resolvable:$true] %s28
      %31 = dma.hbm_to_vmem [thread:$0]  %s27, 256, %s29, [#allocation9]
    $region9: #{tpu_custom_call.1} parent=1 // pred_fallthru
      _
    // Predicated region
    $region10: #{tpu_custom_call.1} parent=1 // pred_check
      _
    $region11: #{tpu_custom_call.1} parent=1 // pred_check_branch
      %33 = sbr.rel (0) target = $region13
    $region12: #{tpu_custom_call.1} parent=1 // pred_region
      %35 = dma.done [#allocation6], 256
    $region13: #{tpu_custom_call.1} parent=1 // pred_fallthru
      _
    // Predicated region
    $region14: #{tpu_custom_call.1} parent=1 // pred_check
      _
    $region15: #{tpu_custom_call.1} parent=1 // pred_check_branch
      %37 = sbr.rel (0) target = $region17
    $region16: #{tpu_custom_call.1} parent=1 // pred_region
      %39 = dma.done [#allocation9], 256
    $region17: #{tpu_custom_call.1} parent=1 // pred_fallthru
      _
    %p40 = scmp.eq.s32.totalorder 0, 0
    // Predicated region
    $region18: #{tpu_custom_call.1} parent=1 // pred_check
      %p41 = pneg %p40
    $region19: #{tpu_custom_call.1} parent=1 // pred_check_branch
      %43 = sbr.rel (%p41) target = $region21
    $region20: #{tpu_custom_call.1} parent=1 // pred_region
      %44 = vst [vmem:[#allocation2] sm:$0xff] 0.0
      %45 = vst [vmem:[#allocation3] sm:$0xff] 0.0
      %46 = vst [vmem:[#allocation4] sm:$0xff] 0.0
    $region21: #{tpu_custom_call.1} parent=1 // pred_fallthru
      _
    %v47 = vld [vmem:[#allocation5] sm:$0xff]
    %v48 = vld [vmem:[#allocation5 + $0x8] sm:$0xff]
    %v49 = vld [vmem:[#allocation8] sm:$0xff]
    %v50 = vld [vmem:[#allocation8 + $0x8] sm:$0xff]
    %v51 = vmax.f32 %v47, 1e-07
    %v52 = vmax.f32 %v48, 1e-07
    %v53 = vmin.f32 %v51, 0.9999999
    %v54 = vmin.f32 %v52, 0.9999999
    %v55 = vsub.f32 0.0, %v53
    %v56 = vsub.f32 0.0, %v54
    %v57 = vadd.f32 %v55, 1.0
    %v58 = vlog2.pop %v57
    %v59 = vmul.f32 %v58, 0.6931472
    %v60 = vmul.f32 -0.5, %v55
    %v61 = vadd.f32 %v60, 1.0
    %v62 = vmul.f32 %v61, %v55
    %v63 = vand.u32 2147483647, %v55
    %vm64 = vcmp.lt.f32.partialorder %v63, 0.0004427343
    %v65 = vsel %vm64, %v62, %v59
    %v66 = vadd.f32 %v56, 1.0
    %v67 = vlog2.pop %v66
    %v68 = vmul.f32 %v67, 0.6931472
    %v69 = vmul.f32 -0.5, %v56
    %v70 = vadd.f32 %v69, 1.0
    %v71 = vmul.f32 %v70, %v56
    %v72 = vand.u32 2147483647, %v56
    %vm73 = vcmp.lt.f32.partialorder %v72, 0.0004427343
    %v74 = vsel %vm73, %v71, %v68
    %v75 = vlog2.pop %v53
    %v76 = vmul.f32 %v75, 0.6931472
    %v77 = vlog2.pop %v54
    %v78 = vmul.f32 %v77, 0.6931472
    %v79 = vsub.f32 %v76, %v65
    %v80 = vsub.f32 %v78, %v74
    %v81 = vmul.f32 %v49, %v79
    %v82 = vmul.f32 %v50, %v80
    %v83 = vadd.f32 %v65, %v81
    %v84 = vadd.f32 %v74, %v82
    %v85 = vsub.f32 0.0, %v83
    %v86 = vsub.f32 0.0, %v84
    %v87 = vmul.f32 %v53, %v49
    %v88 = vmul.f32 %v54, %v50
    %v89 = vadd.f32 %v53, %v49
    %v90 = vadd.f32 %v54, %v50
    %v91 = vld [vmem:[#allocation2] sm:$0xff]
    %v92 = vadd.f32 %v85, %v86
    %v93 = vadd.f32 %v91, %v92
    %94 = vst [vmem:[#allocation2] sm:$0xff] %v93
    %v95 = vld [vmem:[#allocation3] sm:$0xff]
    %v96 = vadd.f32 %v87, %v88
    %v97 = vadd.f32 %v95, %v96
    %98 = vst [vmem:[#allocation3] sm:$0xff] %v97
    %v99 = vld [vmem:[#allocation4] sm:$0xff]
    %v100 = vadd.f32 %v89, %v90
    %v101 = vadd.f32 %v99, %v100
    %102 = vst [vmem:[#allocation4] sm:$0xff] %v101
    // Predicated region
    $region22: #{tpu_custom_call.1} parent=1 // pred_check
      %p103 = pneg %p40
    $region23: #{tpu_custom_call.1} parent=1 // pred_check_branch
      %105 = sbr.rel (%p103) target = $region25
    $region24: #{tpu_custom_call.1} parent=1 // pred_region
      %v106 = vld [vmem:[#allocation2] sm:$0xff]
      %107 = vadd.xlane.f32.xlu0 %v106
      %v108 = vpop.xlane.xlu0 %107
      %v109 = vld [vmem:[#allocation3] sm:$0xff]
      %110 = vadd.xlane.f32.xlu0 %v109
      %v111 = vpop.xlane.xlu0 %110
      %v112 = vld [vmem:[#allocation4] sm:$0xff]
      %113 = vadd.xlane.f32.xlu0 %v112
      %v114 = vpop.xlane.xlu0 %113
      %115 = vst [vmem:[#allocation10] sm:$0xff] 0.0
      %vm116 = vcmask 7168
      %v117 = vsel %vm116, %v108, %v111
      %vm118 = vcmask 15360
      %v119 = vsel %vm118, %v117, %v114
      %vm120 = vcmask 23552
      %121 = vst.msk [vmem:[#allocation10] sm:$0xff] %vm120, %v119
    $region25: #{tpu_custom_call.1} parent=1 // pred_fallthru
      _
    // Predicated region
    $region26: #{tpu_custom_call.1} parent=1 // pred_check
      _
    $region27: #{tpu_custom_call.1} parent=1 // pred_check_branch
      %123 = sbr.rel (0) target = $region29
    $region28: #{tpu_custom_call.1} parent=1 // pred_region
      %125 = vsyncadd [#allocation7], 0
      %s127 = sshll.u32 [#allocation10], 4
      %s128 = int_to_ptr.vmem [resolvable:$true] %s127
      %s129 = sshll.u32 %s2, 4
      %s130 = int_to_ptr.hbm [resolvable:$true] %s129
      %132 = dma.vmem_to_hbm [thread:$0]  %s128, 128, %s130, [#allocation7]
    $region29: #{tpu_custom_call.1} parent=1 // pred_fallthru
      _
    // Predicated region
    $region30: #{tpu_custom_call.1} parent=1 // pred_check
      _
    $region31: #{tpu_custom_call.1} parent=1 // pred_check_branch
      %134 = sbr.rel (0) target = $region33
    $region32: #{tpu_custom_call.1} parent=1 // pred_region
      %136 = dma.done [#allocation7], 128
    $region33: #{tpu_custom_call.1} parent=1 // pred_fallthru
      _
    %137 = vsyncpa [#allocation6], 1
    %138 = vsyncpa [#allocation9], 1
    %139 = vsyncpa [#allocation7], 1

</llo_original>
